<compile_context>
chip_gen: v5e
topology: v5e:2x2
jax: 0.10.0
libtpu: 0.0.40
codegen_flags: <defaults>
</compile_context>

<pallas_src>
import functools

import numpy as np
import jax
import jax.numpy as jnp
from jax.experimental import pallas as pl
from jax.experimental.pallas import tpu as pltpu


def _round_up(x: int, m: int) -> int:
    return ((x + m - 1) // m) * m


def _pad2d(a, rows: int, cols: int):
    r, c = a.shape
    if r == rows and c == cols:
        return a
    return jnp.pad(a, ((0, rows - r), (0, cols - c)))


def _vmem_capacity_bytes() -> int:
    """Physical VMEM of the current TPU generation (conservative fallback: 64 MiB)."""
    try:
        info = pltpu.get_tpu_info()
        cap = int(getattr(info, "vmem_capacity_bytes", 0))
        if cap > 0:
            return cap
    except Exception:  # API unavailable -> stay conservative (safe on every generation)
        pass
    return 64 << 20


def _const_index_map(i):
    return (0, 0)


def _resident_spec(shape, single_buffer: bool):
    """BlockSpec for a weight/bias block that stays resident across the whole grid.

    With a constant index_map the block is not re-fetched between steps; pl.Buffered(1)
    additionally drops the (useless) second pipeline buffer, halving resident VMEM.
    """
    if single_buffer:
        try:
            return pl.BlockSpec(shape, _const_index_map, pipeline_mode=pl.Buffered(1))
        except Exception:  # pipeline_mode / pl.Buffered not available in this build
            pass
    return pl.BlockSpec(shape, _const_index_map)


def _vmem_estimate(tm, pdims, cbytes, single_buffer_weights):
    """Rough resident-VMEM estimate (bytes) for the fused MLP kernel."""
    n_layers = len(pdims) - 1
    wfac = 1 if single_buffer_weights else 2
    w_bytes = sum(pdims[i] * pdims[i + 1] for i in range(n_layers)) * cbytes * wfac
    b_bytes = sum(pdims[1:]) * 4 * wfac
    io_bytes = 2 * tm * (pdims[0] + pdims[-1]) * cbytes   # double-buffered in/out row tiles
    h_bytes = 2 * tm * max(pdims) * 4                      # live f32 intermediates
    return w_bytes + b_bytes + io_bytes + h_bytes + (2 << 20)


def _make_mlp_kernel(n_layers: int, compute_dtype):
    """Kernel refs: (x_ref, w_0..w_{n-1}, b_0..b_{n-1}, out_ref)."""

    def kernel(*refs):
        x_ref = refs[0]
        w_refs = refs[1:1 + n_layers]
        b_refs = refs[1 + n_layers:1 + 2 * n_layers]
        out_ref = refs[1 + 2 * n_layers]

        # Operands stay in the narrow compute dtype (native fast MXU path); f32
        # accumulation via preferred_element_type; bias add / ReLU in f32 on the VPU.
        h = x_ref[...]
        for i in range(n_layers):
            acc = jnp.dot(h, w_refs[i][...], preferred_element_type=jnp.float32)
            acc = acc + b_refs[i][...]
            if i < n_layers - 1:
                h = jnp.maximum(acc, 0.0).astype(compute_dtype)
            else:
                h = acc
        out_ref[...] = h.astype(out_ref.dtype)

    return kernel


def prepare_params(weights, biases, *, compute_dtype=jnp.bfloat16, lane_multiple=128):
    """Pad feature dims to multiples of 128 and cast ONCE (weights reused across calls)."""
    n_layers = len(weights)
    assert len(biases) == n_layers and n_layers >= 1
    dims = [weights[0].shape[0]] + [w.shape[1] for w in weights]
    assert dims[-1] == dims[0], "last layer must project back to d_in"
    pdims = [_round_up(d, lane_multiple) for d in dims]
    wp = tuple(
        _pad2d(jnp.asarray(weights[i]), pdims[i], pdims[i + 1]).astype(compute_dtype)
        for i in range(n_layers)
    )
    bp = tuple(
        _pad2d(jnp.asarray(biases[i]).reshape(1, -1), 1, pdims[i + 1]).astype(jnp.float32)
        for i in range(n_layers)
    )
    return wp, bp


def domain_specific_feature_extractor(x, padded_weights, padded_biases, *, tm=None,
                                      out_dtype=None, single_buffer_weights=True):
    """Runs the whole MLP inside one pallas_call, tiling over (padded) batch rows."""
    n_layers = len(padded_weights)
    assert len(padded_biases) == n_layers
    compute_dtype = padded_weights[0].dtype
    cbytes = padded_weights[0].dtype.itemsize
    M, d_in = x.shape
    pdims = [padded_weights[0].shape[0]] + [w.shape[1] for w in padded_weights]
    assert pdims[0] >= d_in and pdims[-1] >= d_in
    out_dtype = x.dtype if out_dtype is None else np.dtype(out_dtype)

    cap = _vmem_capacity_bytes()
    budget = max(int(cap * 0.85), cap - (16 << 20))  # ~112 MiB on v5e/v6e, ~54 MiB on v7x

    # Row tile: multiples of 16 (bf16 sublane pack).  Single block only for tiny batches;
    # >=2 grid steps for mid-size batches (v7x megacore); 512-row tiles for large batches.
    m16 = _round_up(max(M, 1), 16)
    if tm is None:
        if M <= 32:
            tm = m16
        elif M <= 1024:
            tm = _round_up(-(-M // 2), 16)
        else:
            tm = 512
    else:
        tm = _round_up(int(tm), 16)
    # Shrink tm (real usage reduction, not just a limit clamp) until the footprint fits.
    while tm > 16 and _vmem_estimate(tm, pdims, cbytes, single_buffer_weights) > budget:
        tm = max(16, _round_up(tm // 2, 16))
    # TODO(synk): if even tm=16 does not fit (very large hidden dims), tile each layer's N
    # dimension inside the kernel (VMEM scratch + fori_loop / pltpu.emit_pipeline over
    # weight column blocks) so resident weights become O(tile) instead of O(full layer).

    Mp = _round_up(M, tm)
    xp = _pad2d(x, Mp, pdims[0]).astype(compute_dtype)

    kernel = _make_mlp_kernel(n_layers, compute_dtype)

    in_specs = [pl.BlockSpec((tm, pdims[0]), lambda i: (i, 0))]
    for li in range(n_layers):
        in_specs.append(_resident_spec((pdims[li], pdims[li + 1]), single_buffer_weights))
    for li in range(n_layers):
        in_specs.append(_resident_spec((1, pdims[li + 1]), single_buffer_weights))
    out_spec = pl.BlockSpec((tm, pdims[-1]), lambda i: (i, 0))

    # Kernel output stays in the narrow compute dtype (halves HBM writeback); the wrapper
    # upcasts after the (possibly skipped) slice.
    out_padded = pl.pallas_call(
        kernel,
        out_shape=jax.ShapeDtypeStruct((Mp, pdims[-1]), compute_dtype),
        grid=(Mp // tm,),
        in_specs=in_specs,
        out_specs=out_spec,
        compiler_params=pltpu.CompilerParams(
            dimension_semantics=("parallel",),
            vmem_limit_bytes=int(budget),
        ),
    )(xp, *padded_weights, *padded_biases)

    out = out_padded
    if Mp != M or pdims[-1] != d_in:          # aligned fast path: skip the slice copy
        out = out[:M, :d_in]
    if out.dtype != out_dtype:
        out = out.astype(out_dtype)
    return out


def init_params(key, d_in, hidden_dims):
    """Deterministic PyTorch-style init: U(-1/sqrt(fan_in), 1/sqrt(fan_in))."""
    dims = [d_in] + list(hidden_dims) + [d_in]
    weights, biases = [], []
    for idx in range(len(dims) - 1):
        fan_in, fan_out = dims[idx], dims[idx + 1]
        key, kw, kb = jax.random.split(key, 3)
        bound = 1.0 / float(np.sqrt(fan_in))
        weights.append(jax.random.uniform(kw, (fan_in, fan_out), jnp.float32, -bound, bound))
        biases.append(jax.random.uniform(kb, (fan_out,), jnp.float32, -bound, bound))
    return weights, biases


def reference_mlp(x, weights, biases, compute_dtype=jnp.float32, out_dtype=None):
    """Pure-JAX reference; with compute_dtype=bf16 it mirrors the kernel's numerics."""
    out_dtype = x.dtype if out_dtype is None else out_dtype
    h = x.astype(compute_dtype)
    n = len(weights)
    for i in range(n):
        acc = jnp.dot(h, weights[i].astype(compute_dtype),
                      preferred_element_type=jnp.float32)
        acc = acc + biases[i].reshape(1, -1).astype(jnp.float32)
        if i < n - 1:
            h = jnp.maximum(acc, 0.0).astype(compute_dtype)
        else:
            h = acc.astype(compute_dtype)   # mirror the kernel's narrow output rounding
    return h.astype(out_dtype)


if __name__ == "__main__":
    key = jax.random.PRNGKey(0)

    def run(x, wp, bp, **kw):
        # Prefer single-buffered resident weights; if this JAX build rejects pipeline_mode
        # at lowering/compile time, retry with the default double buffer.
        try:
            fn = jax.jit(functools.partial(domain_specific_feature_extractor,
                                           single_buffer_weights=True, **kw))
            return jax.block_until_ready(fn(x, wp, bp))
        except Exception:
            fn = jax.jit(functools.partial(domain_specific_feature_extractor,
                                           single_buffer_weights=False, **kw))
            return jax.block_until_ready(fn(x, wp, bp))

    # --- Case 1: tiny batch (single row block) ---
    batch, d_in, hidden_dims = 8, 32, [64, 48]
    key, kx = jax.random.split(key)
    x = jax.random.normal(kx, (batch, d_in), jnp.float32)
    weights, biases = init_params(key, d_in, hidden_dims)
    wp, bp = prepare_params(weights, biases)   # pad + cast ONCE, outside the per-call path

    out = run(x, wp, bp)
    assert out.shape == (batch, d_in) and out.dtype == x.dtype
    assert jnp.allclose(out, reference_mlp(x, weights, biases, compute_dtype=jnp.bfloat16),
                        atol=1e-2, rtol=1e-2), "case 1: mismatch vs bf16 reference"
    assert jnp.allclose(out, reference_mlp(x, weights, biases, compute_dtype=jnp.float32),
                        atol=5e-2, rtol=5e-2), "case 1: mismatch vs f32 reference"

    # --- Case 2: ragged shapes (row + lane padding, user tm, multi-step grid) ---
    batch2, d_in2, hidden2 = 200, 96, [160, 72]
    key, kx2 = jax.random.split(key)
    x2 = jax.random.normal(kx2, (batch2, d_in2), jnp.float32)
    w2, b2 = init_params(key, d_in2, hidden2)
    wp2, bp2 = prepare_params(w2, b2)
    out2 = run(x2, wp2, bp2, tm=64)
    assert out2.shape == (batch2, d_in2)
    assert jnp.allclose(out2, reference_mlp(x2, w2, b2, compute_dtype=jnp.bfloat16),
                        atol=1e-2, rtol=1e-2), "case 2: mismatch vs bf16 reference"
    assert jnp.allclose(out2, reference_mlp(x2, w2, b2, compute_dtype=jnp.float32),
                        atol=5e-2, rtol=5e-2), "case 2: mismatch vs f32 reference"

    # --- Case 3: already (16,128)-aligned -> pad/slice fast path, >=2 grid steps ---
    batch3, d_in3, hidden3 = 64, 128, [128]
    key, kx3 = jax.random.split(key)
    x3 = jax.random.normal(kx3, (batch3, d_in3), jnp.float32)
    w3, b3 = init_params(key, d_in3, hidden3)
    wp3, bp3 = prepare_params(w3, b3)
    out3 = run(x3, wp3, bp3)
    assert out3.shape == (batch3, d_in3)
    assert jnp.allclose(out3, reference_mlp(x3, w3, b3, compute_dtype=jnp.bfloat16),
                        atol=1e-2, rtol=1e-2), "case 3: mismatch vs bf16 reference"
    assert jnp.allclose(out3, reference_mlp(x3, w3, b3, compute_dtype=jnp.float32),
                        atol=5e-2, rtol=5e-2), "case 3: mismatch vs f32 reference"

    print("KERNEL_OK")
</pallas_src>

<mosaic_0001>
module attributes {stable_mosaic.version = 11 : i64} {
  func.func @kernel(%arg0: i32, %arg1: memref<16x128xbf16, #tpu.memory_space<vmem>>, %arg2: memref<128x128xbf16, #tpu.memory_space<vmem>>, %arg3: memref<128x128xbf16, #tpu.memory_space<vmem>>, %arg4: memref<128x128xbf16, #tpu.memory_space<vmem>>, %arg5: memref<1x128xf32, #tpu.memory_space<vmem>>, %arg6: memref<1x128xf32, #tpu.memory_space<vmem>>, %arg7: memref<1x128xf32, #tpu.memory_space<vmem>>, %arg8: memref<16x128xbf16, #tpu.memory_space<vmem>>) attributes {dimension_semantics = [#tpu.dimension_semantics<parallel>], iteration_bounds = array<i64: 1>, scalar_prefetch = 0 : i64, scratch_operands = 0 : i64, tpu.core_type = #tpu.core_type<tc>, window_params = [{transform_indices = @transform_0, window_bounds = array<i64: 16, 128>}, {pipeline_mode = #tpu.pipeline_mode<synchronous>, transform_indices = @transform_1, window_bounds = array<i64: 128, 128>}, {pipeline_mode = #tpu.pipeline_mode<synchronous>, transform_indices = @transform_2, window_bounds = array<i64: 128, 128>}, {pipeline_mode = #tpu.pipeline_mode<synchronous>, transform_indices = @transform_3, window_bounds = array<i64: 128, 128>}, {pipeline_mode = #tpu.pipeline_mode<synchronous>, transform_indices = @transform_4, window_bounds = array<i64: 1, 128>}, {pipeline_mode = #tpu.pipeline_mode<synchronous>, transform_indices = @transform_5, window_bounds = array<i64: 1, 128>}, {pipeline_mode = #tpu.pipeline_mode<synchronous>, transform_indices = @transform_6, window_bounds = array<i64: 1, 128>}, {transform_indices = @transform_7, window_bounds = array<i64: 16, 128>}]} {
    %c0 = arith.constant 0 : index
    %c0_0 = arith.constant 0 : index
    %0 = vector.load %arg1[%c0, %c0_0] : memref<16x128xbf16, #tpu.memory_space<vmem>>, vector<16x128xbf16>
    %c0_1 = arith.constant 0 : index
    %c0_2 = arith.constant 0 : index
    %1 = vector.load %arg2[%c0_1, %c0_2] : memref<128x128xbf16, #tpu.memory_space<vmem>>, vector<128x128xbf16>
    %cst = arith.constant dense<0.000000e+00> : vector<16x128xf32>
    %2 = tpu.matmul %0, %1, %cst {dimension_numbers = #tpu.dot_dimension_numbers<[1], [0], [0], [1], [0, 0, 1, 1], [], []>} : vector<16x128xbf16>, vector<128x128xbf16>, vector<16x128xf32> -> vector<16x128xf32>
    %c0_3 = arith.constant 0 : index
    %c0_4 = arith.constant 0 : index
    %3 = vector.load %arg5[%c0_3, %c0_4] : memref<1x128xf32, #tpu.memory_space<vmem>>, vector<1x128xf32>
    %4 = vector.broadcast %3 : vector<1x128xf32> to vector<16x128xf32>
    %5 = arith.addf %2, %4 : vector<16x128xf32>
    %cst_5 = arith.constant 0.000000e+00 : f32
    %6 = vector.broadcast %cst_5 : f32 to vector<16x128xf32>
    %7 = arith.maximumf %5, %6 : vector<16x128xf32>
    %8 = arith.truncf %7 : vector<16x128xf32> to vector<16x128xbf16>
    %c0_6 = arith.constant 0 : index
    %c0_7 = arith.constant 0 : index
    %9 = vector.load %arg3[%c0_6, %c0_7] : memref<128x128xbf16, #tpu.memory_space<vmem>>, vector<128x128xbf16>
    %cst_8 = arith.constant dense<0.000000e+00> : vector<16x128xf32>
    %10 = tpu.matmul %8, %9, %cst_8 {dimension_numbers = #tpu.dot_dimension_numbers<[1], [0], [0], [1], [0, 0, 1, 1], [], []>} : vector<16x128xbf16>, vector<128x128xbf16>, vector<16x128xf32> -> vector<16x128xf32>
    %c0_9 = arith.constant 0 : index
    %c0_10 = arith.constant 0 : index
    %11 = vector.load %arg6[%c0_9, %c0_10] : memref<1x128xf32, #tpu.memory_space<vmem>>, vector<1x128xf32>
    %12 = vector.broadcast %11 : vector<1x128xf32> to vector<16x128xf32>
    %13 = arith.addf %10, %12 : vector<16x128xf32>
    %cst_11 = arith.constant 0.000000e+00 : f32
    %14 = vector.broadcast %cst_11 : f32 to vector<16x128xf32>
    %15 = arith.maximumf %13, %14 : vector<16x128xf32>
    %16 = arith.truncf %15 : vector<16x128xf32> to vector<16x128xbf16>
    %c0_12 = arith.constant 0 : index
    %c0_13 = arith.constant 0 : index
    %17 = vector.load %arg4[%c0_12, %c0_13] : memref<128x128xbf16, #tpu.memory_space<vmem>>, vector<128x128xbf16>
    %cst_14 = arith.constant dense<0.000000e+00> : vector<16x128xf32>
    %18 = tpu.matmul %16, %17, %cst_14 {dimension_numbers = #tpu.dot_dimension_numbers<[1], [0], [0], [1], [0, 0, 1, 1], [], []>} : vector<16x128xbf16>, vector<128x128xbf16>, vector<16x128xf32> -> vector<16x128xf32>
    %c0_15 = arith.constant 0 : index
    %c0_16 = arith.constant 0 : index
    %19 = vector.load %arg7[%c0_15, %c0_16] : memref<1x128xf32, #tpu.memory_space<vmem>>, vector<1x128xf32>
    %20 = vector.broadcast %19 : vector<1x128xf32> to vector<16x128xf32>
    %21 = arith.addf %18, %20 : vector<16x128xf32>
    %22 = arith.truncf %21 : vector<16x128xf32> to vector<16x128xbf16>
    %c0_17 = arith.constant 0 : index
    %c0_18 = arith.constant 0 : index
    %23 = vector.load %arg8[%c0_17, %c0_18] : memref<16x128xbf16, #tpu.memory_space<vmem>>, vector<16x128xbf16>
    tpu.vector_store %arg8[%c0_17, %c0_18], %22 {strides = array<i32>} : memref<16x128xbf16, #tpu.memory_space<vmem>>, vector<16x128xbf16>,
    return
  }
  func.func @transform_0(%arg0: i32) -> (i32, i32) {
    %c0_i32 = arith.constant 0 : i32
    %c0_i32_0 = arith.constant 0 : i32
    return %arg0, %c0_i32 : i32, i32
  }
  func.func @transform_1(%arg0: i32) -> (i32, i32) {
    %c0_i32 = arith.constant 0 : i32
    %c0_i32_0 = arith.constant 0 : i32
    %c0_i32_1 = arith.constant 0 : i32
    return %c0_i32, %c0_i32_0 : i32, i32
  }
  func.func @transform_2(%arg0: i32) -> (i32, i32) {
    %c0_i32 = arith.constant 0 : i32
    %c0_i32_0 = arith.constant 0 : i32
    %c0_i32_1 = arith.constant 0 : i32
    return %c0_i32, %c0_i32_0 : i32, i32
  }
  func.func @transform_3(%arg0: i32) -> (i32, i32) {
    %c0_i32 = arith.constant 0 : i32
    %c0_i32_0 = arith.constant 0 : i32
    %c0_i32_1 = arith.constant 0 : i32
    return %c0_i32, %c0_i32_0 : i32, i32
  }
  func.func @transform_4(%arg0: i32) -> (i32, i32) {
    %c0_i32 = arith.constant 0 : i32
    %c0_i32_0 = arith.constant 0 : i32
    %c0_i32_1 = arith.constant 0 : i32
    return %c0_i32, %c0_i32_0 : i32, i32
  }
  func.func @transform_5(%arg0: i32) -> (i32, i32) {
    %c0_i32 = arith.constant 0 : i32
    %c0_i32_0 = arith.constant 0 : i32
    %c0_i32_1 = arith.constant 0 : i32
    return %c0_i32, %c0_i32_0 : i32, i32
  }
  func.func @transform_6(%arg0: i32) -> (i32, i32) {
    %c0_i32 = arith.constant 0 : i32
    %c0_i32_0 = arith.constant 0 : i32
    %c0_i32_1 = arith.constant 0 : i32
    return %c0_i32, %c0_i32_0 : i32, i32
  }
  func.func @transform_7(%arg0: i32) -> (i32, i32) {
    %c0_i32 = arith.constant 0 : i32
    %c0_i32_0 = arith.constant 0 : i32
    return %arg0, %c0_i32 : i32, i32
  }
}

module attributes {stable_mosaic.version = 11 : i64} {
  func.func @kernel(%arg0: i32, %arg1: memref<16x128xbf16, #tpu.memory_space<vmem>>, %arg2: memref<128x128xbf16, #tpu.memory_space<vmem>>, %arg3: memref<128x128xbf16, #tpu.memory_space<vmem>>, %arg4: memref<128x128xbf16, #tpu.memory_space<vmem>>, %arg5: memref<1x128xf32, #tpu.memory_space<vmem>>, %arg6: memref<1x128xf32, #tpu.memory_space<vmem>>, %arg7: memref<1x128xf32, #tpu.memory_space<vmem>>, %arg8: memref<16x128xbf16, #tpu.memory_space<vmem>>) attributes {dimension_semantics = [#tpu.dimension_semantics<parallel>], iteration_bounds = array<i64: 1>, scalar_prefetch = 0 : i64, scratch_operands = 0 : i64, tpu.core_type = #tpu.core_type<tc>, window_params = [{transform_indices = @transform_0, window_bounds = array<i64: 16, 128>}, {pipeline_mode = #tpu.pipeline_mode<synchronous>, transform_indices = @transform_1, window_bounds = array<i64: 128, 128>}, {pipeline_mode = #tpu.pipeline_mode<synchronous>, transform_indices = @transform_2, window_bounds = array<i64: 128, 128>}, {pipeline_mode = #tpu.pipeline_mode<synchronous>, transform_indices = @transform_3, window_bounds = array<i64: 128, 128>}, {pipeline_mode = #tpu.pipeline_mode<synchronous>, transform_indices = @transform_4, window_bounds = array<i64: 1, 128>}, {pipeline_mode = #tpu.pipeline_mode<synchronous>, transform_indices = @transform_5, window_bounds = array<i64: 1, 128>}, {pipeline_mode = #tpu.pipeline_mode<synchronous>, transform_indices = @transform_6, window_bounds = array<i64: 1, 128>}, {transform_indices = @transform_7, window_bounds = array<i64: 16, 128>}]} {
    %c0 = arith.constant 0 : index
    %c0_0 = arith.constant 0 : index
    %0 = vector.load %arg1[%c0, %c0_0] : memref<16x128xbf16, #tpu.memory_space<vmem>>, vector<16x128xbf16>
    %c0_1 = arith.constant 0 : index
    %c0_2 = arith.constant 0 : index
    %1 = vector.load %arg2[%c0_1, %c0_2] : memref<128x128xbf16, #tpu.memory_space<vmem>>, vector<128x128xbf16>
    %cst = arith.constant dense<0.000000e+00> : vector<16x128xf32>
    %2 = tpu.matmul %0, %1, %cst {dimension_numbers = #tpu.dot_dimension_numbers<[1], [0], [0], [1], [0, 0, 1, 1], [], []>} : vector<16x128xbf16>, vector<128x128xbf16>, vector<16x128xf32> -> vector<16x128xf32>
    %c0_3 = arith.constant 0 : index
    %c0_4 = arith.constant 0 : index
    %3 = vector.load %arg5[%c0_3, %c0_4] : memref<1x128xf32, #tpu.memory_space<vmem>>, vector<1x128xf32>
    %4 = vector.broadcast %3 : vector<1x128xf32> to vector<16x128xf32>
    %5 = arith.addf %2, %4 : vector<16x128xf32>
    %cst_5 = arith.constant 0.000000e+00 : f32
    %6 = vector.broadcast %cst_5 : f32 to vector<16x128xf32>
    %7 = arith.maximumf %5, %6 : vector<16x128xf32>
    %8 = arith.truncf %7 : vector<16x128xf32> to vector<16x128xbf16>
    %c0_6 = arith.constant 0 : index
    %c0_7 = arith.constant 0 : index
    %9 = vector.load %arg3[%c0_6, %c0_7] : memref<128x128xbf16, #tpu.memory_space<vmem>>, vector<128x128xbf16>
    %cst_8 = arith.constant dense<0.000000e+00> : vector<16x128xf32>
    %10 = tpu.matmul %8, %9, %cst_8 {dimension_numbers = #tpu.dot_dimension_numbers<[1], [0], [0], [1], [0, 0, 1, 1], [], []>} : vector<16x128xbf16>, vector<128x128xbf16>, vector<16x128xf32> -> vector<16x128xf32>
    %c0_9 = arith.constant 0 : index
    %c0_10 = arith.constant 0 : index
    %11 = vector.load %arg6[%c0_9, %c0_10] : memref<1x128xf32, #tpu.memory_space<vmem>>, vector<1x128xf32>
    %12 = vector.broadcast %11 : vector<1x128xf32> to vector<16x128xf32>
    %13 = arith.addf %10, %12 : vector<16x128xf32>
    %cst_11 = arith.constant 0.000000e+00 : f32
    %14 = vector.broadcast %cst_11 : f32 to vector<16x128xf32>
    %15 = arith.maximumf %13, %14 : vector<16x128xf32>
    %16 = arith.truncf %15 : vector<16x128xf32> to vector<16x128xbf16>
    %c0_12 = arith.constant 0 : index
    %c0_13 = arith.constant 0 : index
    %17 = vector.load %arg4[%c0_12, %c0_13] : memref<128x128xbf16, #tpu.memory_space<vmem>>, vector<128x128xbf16>
    %cst_14 = arith.constant dense<0.000000e+00> : vector<16x128xf32>
    %18 = tpu.matmul %16, %17, %cst_14 {dimension_numbers = #tpu.dot_dimension_numbers<[1], [0], [0], [1], [0, 0, 1, 1], [], []>} : vector<16x128xbf16>, vector<128x128xbf16>, vector<16x128xf32> -> vector<16x128xf32>
    %c0_15 = arith.constant 0 : index
    %c0_16 = arith.constant 0 : index
    %19 = vector.load %arg7[%c0_15, %c0_16] : memref<1x128xf32, #tpu.memory_space<vmem>>, vector<1x128xf32>
    %20 = vector.broadcast %19 : vector<1x128xf32> to vector<16x128xf32>
    %21 = arith.addf %18, %20 : vector<16x128xf32>
    %22 = arith.truncf %21 : vector<16x128xf32> to vector<16x128xbf16>
    %c0_17 = arith.constant 0 : index
    %c0_18 = arith.constant 0 : index
    %23 = vector.load %arg8[%c0_17, %c0_18] : memref<16x128xbf16, #tpu.memory_space<vmem>>, vector<16x128xbf16>
    tpu.vector_store %arg8[%c0_17, %c0_18], %22 {strides = array<i32>} : memref<16x128xbf16, #tpu.memory_space<vmem>>, vector<16x128xbf16>,
    return
  }
  func.func @transform_0(%arg0: i32) -> (i32, i32) {
    %c0_i32 = arith.constant 0 : i32
    %c0_i32_0 = arith.constant 0 : i32
    return %arg0, %c0_i32 : i32, i32
  }
  func.func @transform_1(%arg0: i32) -> (i32, i32) {
    %c0_i32 = arith.constant 0 : i32
    %c0_i32_0 = arith.constant 0 : i32
    %c0_i32_1 = arith.constant 0 : i32
    return %c0_i32, %c0_i32_0 : i32, i32
  }
  func.func @transform_2(%arg0: i32) -> (i32, i32) {
    %c0_i32 = arith.constant 0 : i32
    %c0_i32_0 = arith.constant 0 : i32
    %c0_i32_1 = arith.constant 0 : i32
    return %c0_i32, %c0_i32_0 : i32, i32
  }
  func.func @transform_3(%arg0: i32) -> (i32, i32) {
    %c0_i32 = arith.constant 0 : i32
    %c0_i32_0 = arith.constant 0 : i32
    %c0_i32_1 = arith.constant 0 : i32
    return %c0_i32, %c0_i32_0 : i32, i32
  }
  func.func @transform_4(%arg0: i32) -> (i32, i32) {
    %c0_i32 = arith.constant 0 : i32
    %c0_i32_0 = arith.constant 0 : i32
    %c0_i32_1 = arith.constant 0 : i32
    return %c0_i32, %c0_i32_0 : i32, i32
  }
  func.func @transform_5(%arg0: i32) -> (i32, i32) {
    %c0_i32 = arith.constant 0 : i32
    %c0_i32_0 = arith.constant 0 : i32
    %c0_i32_1 = arith.constant 0 : i32
    return %c0_i32, %c0_i32_0 : i32, i32
  }
  func.func @transform_6(%arg0: i32) -> (i32, i32) {
    %c0_i32 = arith.constant 0 : i32
    %c0_i32_0 = arith.constant 0 : i32
    %c0_i32_1 = arith.constant 0 : i32
    return %c0_i32, %c0_i32_0 : i32, i32
  }
  func.func @transform_7(%arg0: i32) -> (i32, i32) {
    %c0_i32 = arith.constant 0 : i32
    %c0_i32_0 = arith.constant 0 : i32
    return %arg0, %c0_i32 : i32, i32
  }
}

</mosaic_0001>

<llo_original>
// kernel: domain_specific_feature_extractor.1
$region0: #{domain_specific_feature_extractor.1}
  #allocation0 [shape = 'u32[]', space=smem, size = 0x4, offset = 0x4, fixed_abs, tag = 'smem constant byte address 0x4 - core index']
  #allocation1 [shape = 'u32[72,128]{1,0:T(1,128)}', space=vmem, size = 0x9000, scoped, tag = 'internal scratch']
  %s0 = inlined_call_operand.vmem [shape: bf16[16,128], index: 0, kind: input, shape index: {}]
  %s1 = inlined_call_operand.hbm [shape: bf16[128,128], index: 1, kind: input, shape index: {}]
  %s2 = inlined_call_operand.hbm [shape: bf16[128,128], index: 2, kind: input, shape index: {}]
  %s3 = inlined_call_operand.hbm [shape: bf16[128,128], index: 3, kind: input, shape index: {}]
  %s4 = inlined_call_operand.vmem [shape: f32[1,128], index: 4, kind: input, shape index: {}]
  %s5 = inlined_call_operand.vmem [shape: f32[1,128], index: 5, kind: input, shape index: {}]
  %s6 = inlined_call_operand.vmem [shape: f32[1,128], index: 6, kind: input, shape index: {}]
  %s7 = inlined_call_operand.vmem [shape: bf16[16,128], index: 7, kind: output, shape index: {}]
  %s8 = sld [smem:[#allocation0]]
  $region50: #{domain_specific_feature_extractor.1} parent=0
    _
  %s10 = ssub.s32 1, %s8
  %s11 = scalar_select 0, %s10, %s8
  $region1: #{domain_specific_feature_extractor.1} parent=0
    #allocation2 [shape = 'u8[32768]{0}', space=vmem, size = 0x8000, scoped, tag = 'input window, operand 1, single buffered']
    #allocation3 [shape = 's32[1]{0}', space=sflag, size = 0x4, scoped, tag = 'scoped memory for domain_specific_feature_extractor.1']
    #allocation4 [shape = 'u8[32768]{0}', space=vmem, size = 0x8000, scoped, tag = 'input window, operand 2, single buffered']
    #allocation5 [shape = 's32[1]{0}', space=sflag, size = 0x4, scoped, tag = 'scoped memory for domain_specific_feature_extractor.1']
    #allocation6 [shape = 'u8[32768]{0}', space=vmem, size = 0x8000, scoped, tag = 'input window, operand 3, single buffered']
    %12 = vsyncpa [#allocation3], 0
    %13 = vsyncpa [#allocation5], 0
    // Predicated region
    $region2: #{domain_specific_feature_extractor.1} parent=1 // pred_check
      _
    $region3: #{domain_specific_feature_extractor.1} parent=1 // pred_check_branch
      %15 = sbr.rel (0) target = $region5
    $region4: #{domain_specific_feature_extractor.1} parent=1 // pred_region
      _
    $region5: #{domain_specific_feature_extractor.1} parent=1 // pred_fallthru
      _
    // Predicated region
    $region6: #{domain_specific_feature_extractor.1} parent=1 // pred_check
      _
    $region7: #{domain_specific_feature_extractor.1} parent=1 // pred_check_branch
      %17 = sbr.rel (0) target = $region9
    $region8: #{domain_specific_feature_extractor.1} parent=1 // pred_region
      %19 = vsyncadd [#allocation3], 0
      %s20 = sshll.u32 %s1, 4
      %s21 = int_to_ptr.hbm [resolvable:$true] %s20
      %s22 = sshll.u32 [#allocation2], 4
      %s23 = int_to_ptr.vmem [resolvable:$true] %s22
      %28 = dma.hbm_to_vmem [thread:$0]  %s21, 1024, %s23, [#allocation3], 64, 64, 4
    $region9: #{domain_specific_feature_extractor.1} parent=1 // pred_fallthru
      _
    // Predicated region
    $region10: #{domain_specific_feature_extractor.1} parent=1 // pred_check
      _
    $region11: #{domain_specific_feature_extractor.1} parent=1 // pred_check_branch
      %30 = sbr.rel (0) target = $region13
    $region12: #{domain_specific_feature_extractor.1} parent=1 // pred_region
      %32 = vsyncadd [#allocation5], 0
      %s33 = sshll.u32 %s2, 4
      %s34 = int_to_ptr.hbm [resolvable:$true] %s33
      %s35 = sshll.u32 [#allocation4], 4
      %s36 = int_to_ptr.vmem [resolvable:$true] %s35
      %41 = dma.hbm_to_vmem [thread:$0]  %s34, 1024, %s36, [#allocation5], 64, 64, 4
    $region13: #{domain_specific_feature_extractor.1} parent=1 // pred_fallthru
      _
    // Predicated region
    $region14: #{domain_specific_feature_extractor.1} parent=1 // pred_check
      _
    $region15: #{domain_specific_feature_extractor.1} parent=1 // pred_check_branch
      %43 = sbr.rel (0) target = $region17
    $region16: #{domain_specific_feature_extractor.1} parent=1 // pred_region
      %45 = vsyncadd [#allocation5], 0
      %s46 = sshll.u32 %s3, 4
      %s47 = int_to_ptr.hbm [resolvable:$true] %s46
      %s48 = sshll.u32 [#allocation6], 4
      %s49 = int_to_ptr.vmem [resolvable:$true] %s48
      %54 = dma.hbm_to_vmem [thread:$0]  %s47, 1024, %s49, [#allocation5], 64, 64, 4
    $region17: #{domain_specific_feature_extractor.1} parent=1 // pred_fallthru
      _
    // Predicated region
    $region18: #{domain_specific_feature_extractor.1} parent=1 // pred_check
      _
    $region19: #{domain_specific_feature_extractor.1} parent=1 // pred_check_branch
      %56 = sbr.rel (0) target = $region21
    $region20: #{domain_specific_feature_extractor.1} parent=1 // pred_region
      _
    $region21: #{domain_specific_feature_extractor.1} parent=1 // pred_fallthru
      _
    // Predicated region
    $region22: #{domain_specific_feature_extractor.1} parent=1 // pred_check
      _
    $region23: #{domain_specific_feature_extractor.1} parent=1 // pred_check_branch
      %58 = sbr.rel (0) target = $region25
    $region24: #{domain_specific_feature_extractor.1} parent=1 // pred_region
      _
    $region25: #{domain_specific_feature_extractor.1} parent=1 // pred_fallthru
      _
    // Predicated region
    $region26: #{domain_specific_feature_extractor.1} parent=1 // pred_check
      _
    $region27: #{domain_specific_feature_extractor.1} parent=1 // pred_check_branch
      %60 = sbr.rel (0) target = $region29
    $region28: #{domain_specific_feature_extractor.1} parent=1 // pred_region
      _
    $region29: #{domain_specific_feature_extractor.1} parent=1 // pred_fallthru
      _
    // Predicated region
    $region30: #{domain_specific_feature_extractor.1} parent=1 // pred_check
      _
    $region31: #{domain_specific_feature_extractor.1} parent=1 // pred_check_branch
      %62 = sbr.rel (0) target = $region33
    $region32: #{domain_specific_feature_extractor.1} parent=1 // pred_region
      %64 = dma.done [#allocation3], 1024
    $region33: #{domain_specific_feature_extractor.1} parent=1 // pred_fallthru
      _
    // Predicated region
    $region34: #{domain_specific_feature_extractor.1} parent=1 // pred_check
      _
    $region35: #{domain_specific_feature_extractor.1} parent=1 // pred_check_branch
      %66 = sbr.rel (0) target = $region37
    $region36: #{domain_specific_feature_extractor.1} parent=1 // pred_region
      %68 = dma.done [#allocation5], 1024
    $region37: #{domain_specific_feature_extractor.1} parent=1 // pred_fallthru
      _
    // Predicated region
    $region38: #{domain_specific_feature_extractor.1} parent=1 // pred_check
      _
    $region39: #{domain_specific_feature_extractor.1} parent=1 // pred_check_branch
      %70 = sbr.rel (0) target = $region41
    $region40: #{domain_specific_feature_extractor.1} parent=1 // pred_region
      %72 = dma.done [#allocation5], 1024
    $region41: #{domain_specific_feature_extractor.1} parent=1 // pred_fallthru
      _
    %v73 = vld [vmem:[%s0] sm:$0xf]
    %v74 = vld [vmem:[%s0 + $0x4] sm:$0xf]
    %v75 = vld [vmem:[#allocation2] sm:$0xf]
    %v76 = vld [vmem:[#allocation2 + $0x4] sm:$0xf]
    %v77 = vld [vmem:[#allocation2 + $0x8] sm:$0xf]
    %v78 = vld [vmem:[#allocation2 + $0xc] sm:$0xf]
    %v79 = vld [vmem:[#allocation2 + $0x10] sm:$0xf]
    %v80 = vld [vmem:[#allocation2 + $0x14] sm:$0xf]
    %v81 = vld [vmem:[#allocation2 + $0x18] sm:$0xf]
    %v82 = vld [vmem:[#allocation2 + $0x1c] sm:$0xf]
    %v83 = vld [vmem:[#allocation2 + $0x20] sm:$0xf]
    %v84 = vld [vmem:[#allocation2 + $0x24] sm:$0xf]
    %v85 = vld [vmem:[#allocation2 + $0x28] sm:$0xf]
    %v86 = vld [vmem:[#allocation2 + $0x2c] sm:$0xf]
    %v87 = vld [vmem:[#allocation2 + $0x30] sm:$0xf]
    %v88 = vld [vmem:[#allocation2 + $0x34] sm:$0xf]
    %v89 = vld [vmem:[#allocation2 + $0x38] sm:$0xf]
    %v90 = vld [vmem:[#allocation2 + $0x3c] sm:$0xf]
    %v91 = vld [vmem:[%s4] sm:$0x1]
    %v93 = vperm.slane %v91, 0
    %v97 = vunpack.c.l.b16 %v73
    %v98 = vunpack.c.l.b16 %v74
    %v99 = vpack.c.b16 %v98, %v97
    %v117 = vunpack.c.l.b16 %v75
    %v118 = vunpack.c.l.b16 %v76
    %v119 = vunpack.c.l.b16 %v77
    %v120 = vunpack.c.l.b16 %v78
    %v121 = vunpack.c.l.b16 %v79
    %v122 = vunpack.c.l.b16 %v80
    %v123 = vunpack.c.l.b16 %v81
    %v124 = vunpack.c.l.b16 %v82
    %v125 = vunpack.c.l.b16 %v83
    %v126 = vunpack.c.l.b16 %v84
    %v127 = vunpack.c.l.b16 %v85
    %v128 = vunpack.c.l.b16 %v86
    %v129 = vunpack.c.l.b16 %v87
    %v130 = vunpack.c.l.b16 %v88
    %v131 = vunpack.c.l.b16 %v89
    %v132 = vunpack.c.l.b16 %v90
    %v133 = vpack.c.b16 %v118, %v117
    %v134 = vpack.c.b16 %v120, %v119
    %v135 = vpack.c.b16 %v122, %v121
    %v136 = vpack.c.b16 %v124, %v123
    %v137 = vpack.c.b16 %v126, %v125
    %v138 = vpack.c.b16 %v128, %v127
    %v139 = vpack.c.b16 %v130, %v129
    %v140 = vpack.c.b16 %v132, %v131
    %149 = vmatpush.bf16.msra.mxu0 %v140
    %150 = vmatpush.bf16.msra.mxu0 %v139
    %151 = vmatpush.bf16.msra.mxu0 %v138
    %152 = vmatpush.bf16.msra.mxu0 %v137
    %153 = vmatpush.bf16.msra.mxu0 %v136
    %154 = vmatpush.bf16.msra.mxu0 %v135
    %155 = vmatpush.bf16.msra.mxu0 %v134
    %156 = vmatpush.bf16.msra.mxu0 %v133
    %157 = vmatmul.bf16.gmra.mxu0 %v99
    %v158 = vpop.f32.mrf.mxu0
    %v159 = vadd.f32 %v93, %v158
    %v160 = vpop.f32.mrf.mxu0
    %v161 = vadd.f32 %v93, %v160
    %162 = vdwg.mxu0
    %v163 = vmax.f32 %v159, 0.0
    %v164 = vmax.f32 %v161, 0.0
    %v165 = vpack.c.bf16 %v164, %v163
    %v166 = vld [vmem:[#allocation4] sm:$0xf]
    %v167 = vld [vmem:[#allocation4 + $0x4] sm:$0xf]
    %v168 = vld [vmem:[#allocation4 + $0x8] sm:$0xf]
    %v169 = vld [vmem:[#allocation4 + $0xc] sm:$0xf]
    %v170 = vld [vmem:[#allocation4 + $0x10] sm:$0xf]
    %v171 = vld [vmem:[#allocation4 + $0x14] sm:$0xf]
    %v172 = vld [vmem:[#allocation4 + $0x18] sm:$0xf]
    %v173 = vld [vmem:[#allocation4 + $0x1c] sm:$0xf]
    %v174 = vld [vmem:[#allocation4 + $0x20] sm:$0xf]
    %v175 = vld [vmem:[#allocation4 + $0x24] sm:$0xf]
    %v176 = vld [vmem:[#allocation4 + $0x28] sm:$0xf]
    %v177 = vld [vmem:[#allocation4 + $0x2c] sm:$0xf]
    %v178 = vld [vmem:[#allocation4 + $0x30] sm:$0xf]
    %v179 = vld [vmem:[#allocation4 + $0x34] sm:$0xf]
    %v180 = vld [vmem:[#allocation4 + $0x38] sm:$0xf]
    %v181 = vld [vmem:[#allocation4 + $0x3c] sm:$0xf]
    %v182 = vld [vmem:[%s5] sm:$0x1]
    %v184 = vperm.slane %v182, 0
    %v202 = vunpack.c.l.b16 %v166
    %v203 = vunpack.c.l.b16 %v167
    %v204 = vunpack.c.l.b16 %v168
    %v205 = vunpack.c.l.b16 %v169
    %v206 = vunpack.c.l.b16 %v170
    %v207 = vunpack.c.l.b16 %v171
    %v208 = vunpack.c.l.b16 %v172
    %v209 = vunpack.c.l.b16 %v173
    %v210 = vunpack.c.l.b16 %v174
    %v211 = vunpack.c.l.b16 %v175
    %v212 = vunpack.c.l.b16 %v176
    %v213 = vunpack.c.l.b16 %v177
    %v214 = vunpack.c.l.b16 %v178
    %v215 = vunpack.c.l.b16 %v179
    %v216 = vunpack.c.l.b16 %v180
    %v217 = vunpack.c.l.b16 %v181
    %v218 = vpack.c.b16 %v203, %v202
    %v219 = vpack.c.b16 %v205, %v204
    %v220 = vpack.c.b16 %v207, %v206
    %v221 = vpack.c.b16 %v209, %v208
    %v222 = vpack.c.b16 %v211, %v210
    %v223 = vpack.c.b16 %v213, %v212
    %v224 = vpack.c.b16 %v215, %v214
    %v225 = vpack.c.b16 %v217, %v216
    %234 = vmatpush.bf16.msra.mxu0 %v225
    %235 = vmatpush.bf16.msra.mxu0 %v224
    %236 = vmatpush.bf16.msra.mxu0 %v223
    %237 = vmatpush.bf16.msra.mxu0 %v222
    %238 = vmatpush.bf16.msra.mxu0 %v221
    %239 = vmatpush.bf16.msra.mxu0 %v220
    %240 = vmatpush.bf16.msra.mxu0 %v219
    %241 = vmatpush.bf16.msra.mxu0 %v218
    %242 = vmatmul.bf16.gmra.mxu0 %v165
    %v243 = vpop.f32.mrf.mxu0
    %v244 = vadd.f32 %v184, %v243
    %v245 = vpop.f32.mrf.mxu0
    %v246 = vadd.f32 %v184, %v245
    %247 = vdwg.mxu0
    %v248 = vmax.f32 %v244, 0.0
    %v249 = vmax.f32 %v246, 0.0
    %v250 = vpack.c.bf16 %v249, %v248
    %v251 = vld [vmem:[#allocation6] sm:$0xf]
    %v252 = vld [vmem:[#allocation6 + $0x4] sm:$0xf]
    %v253 = vld [vmem:[#allocation6 + $0x8] sm:$0xf]
    %v254 = vld [vmem:[#allocation6 + $0xc] sm:$0xf]
    %v255 = vld [vmem:[#allocation6 + $0x10] sm:$0xf]
    %v256 = vld [vmem:[#allocation6 + $0x14] sm:$0xf]
    %v257 = vld [vmem:[#allocation6 + $0x18] sm:$0xf]
    %v258 = vld [vmem:[#allocation6 + $0x1c] sm:$0xf]
    %v259 = vld [vmem:[#allocation6 + $0x20] sm:$0xf]
    %v260 = vld [vmem:[#allocation6 + $0x24] sm:$0xf]
    %v261 = vld [vmem:[#allocation6 + $0x28] sm:$0xf]
    %v262 = vld [vmem:[#allocation6 + $0x2c] sm:$0xf]
    %v263 = vld [vmem:[#allocation6 + $0x30] sm:$0xf]
    %v264 = vld [vmem:[#allocation6 + $0x34] sm:$0xf]
    %v265 = vld [vmem:[#allocation6 + $0x38] sm:$0xf]
    %v266 = vld [vmem:[#allocation6 + $0x3c] sm:$0xf]
    %v267 = vld [vmem:[%s6] sm:$0x1]
    %v269 = vperm.slane %v267, 0
    %v287 = vunpack.c.l.b16 %v251
    %v288 = vunpack.c.l.b16 %v252
    %v289 = vunpack.c.l.b16 %v253
    %v290 = vunpack.c.l.b16 %v254
    %v291 = vunpack.c.l.b16 %v255
    %v292 = vunpack.c.l.b16 %v256
    %v293 = vunpack.c.l.b16 %v257
    %v294 = vunpack.c.l.b16 %v258
    %v295 = vunpack.c.l.b16 %v259
    %v296 = vunpack.c.l.b16 %v260
    %v297 = vunpack.c.l.b16 %v261
    %v298 = vunpack.c.l.b16 %v262
    %v299 = vunpack.c.l.b16 %v263
    %v300 = vunpack.c.l.b16 %v264
    %v301 = vunpack.c.l.b16 %v265
    %v302 = vunpack.c.l.b16 %v266
    %v303 = vpack.c.b16 %v288, %v287
    %v304 = vpack.c.b16 %v290, %v289
    %v305 = vpack.c.b16 %v292, %v291
    %v306 = vpack.c.b16 %v294, %v293
    %v307 = vpack.c.b16 %v296, %v295
    %v308 = vpack.c.b16 %v298, %v297
    %v309 = vpack.c.b16 %v300, %v299
    %v310 = vpack.c.b16 %v302, %v301
    %319 = vmatpush.bf16.msra.mxu0 %v310
    %320 = vmatpush.bf16.msra.mxu0 %v309
    %321 = vmatpush.bf16.msra.mxu0 %v308
    %322 = vmatpush.bf16.msra.mxu0 %v307
    %323 = vmatpush.bf16.msra.mxu0 %v306
    %324 = vmatpush.bf16.msra.mxu0 %v305
    %325 = vmatpush.bf16.msra.mxu0 %v304
    %326 = vmatpush.bf16.msra.mxu0 %v303
    %327 = vmatmul.bf16.gmra.mxu0 %v250
    %v328 = vpop.f32.mrf.mxu0
    %v329 = vadd.f32 %v269, %v328
    %v330 = vpop.f32.mrf.mxu0
    %v331 = vadd.f32 %v269, %v330
    %332 = vdwg.mxu0
    %v333 = vpack.c.bf16 %v329, %v329
    %v334 = vpack.c.bf16 %v331, %v331
    %335 = vst [vmem:[%s7] sm:$0xf] %v333
    %336 = vst [vmem:[%s7 + $0x4] sm:$0xf] %v334
    // Predicated region
    $region42: #{domain_specific_feature_extractor.1} parent=1 // pred_check
      _
    $region43: #{domain_specific_feature_extractor.1} parent=1 // pred_check_branch
      %338 = sbr.rel (0) target = $region45
    $region44: #{domain_specific_feature_extractor.1} parent=1 // pred_region
      _
    $region45: #{domain_specific_feature_extractor.1} parent=1 // pred_fallthru
      _
    // Predicated region
    $region46: #{domain_specific_feature_extractor.1} parent=1 // pred_check
      _
    $region47: #{domain_specific_feature_extractor.1} parent=1 // pred_check_branch
      %340 = sbr.rel (0) target = $region49
    $region48: #{domain_specific_feature_extractor.1} parent=1 // pred_region
      _
    $region49: #{domain_specific_feature_extractor.1} parent=1 // pred_fallthru
      _
    %341 = vsyncpa [#allocation3], 1
    %342 = vsyncpa [#allocation5], 1

// kernel: domain_specific_feature_extractor.1
$region0: #{domain_specific_feature_extractor.1}
  #allocation0 [shape = 'u32[]', space=smem, size = 0x4, offset = 0x4, fixed_abs, tag = 'smem constant byte address 0x4 - core index']
  #allocation1 [shape = 'u32[72,128]{1,0:T(1,128)}', space=vmem, size = 0x9000, scoped, tag = 'internal scratch']
  %s0 = inlined_call_operand.vmem [shape: bf16[16,128], index: 0, kind: input, shape index: {}]
  %s1 = inlined_call_operand.hbm [shape: bf16[128,128], index: 1, kind: input, shape index: {}]
  %s2 = inlined_call_operand.hbm [shape: bf16[128,128], index: 2, kind: input, shape index: {}]
  %s3 = inlined_call_operand.hbm [shape: bf16[128,128], index: 3, kind: input, shape index: {}]
  %s4 = inlined_call_operand.vmem [shape: f32[1,128], index: 4, kind: input, shape index: {}]
  %s5 = inlined_call_operand.vmem [shape: f32[1,128], index: 5, kind: input, shape index: {}]
  %s6 = inlined_call_operand.vmem [shape: f32[1,128], index: 6, kind: input, shape index: {}]
  %s7 = inlined_call_operand.vmem [shape: bf16[16,128], index: 7, kind: output, shape index: {}]
  %s8 = sld [smem:[#allocation0]]
  $region50: #{domain_specific_feature_extractor.1} parent=0
    _
  %s10 = ssub.s32 1, %s8
  %s11 = scalar_select 0, %s10, %s8
  $region1: #{domain_specific_feature_extractor.1} parent=0
    #allocation2 [shape = 'u8[32768]{0}', space=vmem, size = 0x8000, scoped, tag = 'input window, operand 1, single buffered']
    #allocation3 [shape = 's32[1]{0}', space=sflag, size = 0x4, scoped, tag = 'scoped memory for domain_specific_feature_extractor.1']
    #allocation4 [shape = 'u8[32768]{0}', space=vmem, size = 0x8000, scoped, tag = 'input window, operand 2, single buffered']
    #allocation5 [shape = 's32[1]{0}', space=sflag, size = 0x4, scoped, tag = 'scoped memory for domain_specific_feature_extractor.1']
    #allocation6 [shape = 'u8[32768]{0}', space=vmem, size = 0x8000, scoped, tag = 'input window, operand 3, single buffered']
    %12 = vsyncpa [#allocation3], 0
    %13 = vsyncpa [#allocation5], 0
    // Predicated region
    $region2: #{domain_specific_feature_extractor.1} parent=1 // pred_check
      _
    $region3: #{domain_specific_feature_extractor.1} parent=1 // pred_check_branch
      %15 = sbr.rel (0) target = $region5
    $region4: #{domain_specific_feature_extractor.1} parent=1 // pred_region
      _
    $region5: #{domain_specific_feature_extractor.1} parent=1 // pred_fallthru
      _
    // Predicated region
    $region6: #{domain_specific_feature_extractor.1} parent=1 // pred_check
      _
    $region7: #{domain_specific_feature_extractor.1} parent=1 // pred_check_branch
      %17 = sbr.rel (0) target = $region9
    $region8: #{domain_specific_feature_extractor.1} parent=1 // pred_region
      %19 = vsyncadd [#allocation3], 0
      %s20 = sshll.u32 %s1, 4
      %s21 = int_to_ptr.hbm [resolvable:$true] %s20
      %s22 = sshll.u32 [#allocation2], 4
      %s23 = int_to_ptr.vmem [resolvable:$true] %s22
      %28 = dma.hbm_to_vmem [thread:$0]  %s21, 1024, %s23, [#allocation3], 64, 64, 4
    $region9: #{domain_specific_feature_extractor.1} parent=1 // pred_fallthru
      _
    // Predicated region
    $region10: #{domain_specific_feature_extractor.1} parent=1 // pred_check
      _
    $region11: #{domain_specific_feature_extractor.1} parent=1 // pred_check_branch
      %30 = sbr.rel (0) target = $region13
    $region12: #{domain_specific_feature_extractor.1} parent=1 // pred_region
      %32 = vsyncadd [#allocation5], 0
      %s33 = sshll.u32 %s2, 4
      %s34 = int_to_ptr.hbm [resolvable:$true] %s33
      %s35 = sshll.u32 [#allocation4], 4
      %s36 = int_to_ptr.vmem [resolvable:$true] %s35
      %41 = dma.hbm_to_vmem [thread:$0]  %s34, 1024, %s36, [#allocation5], 64, 64, 4
    $region13: #{domain_specific_feature_extractor.1} parent=1 // pred_fallthru
      _
    // Predicated region
    $region14: #{domain_specific_feature_extractor.1} parent=1 // pred_check
      _
    $region15: #{domain_specific_feature_extractor.1} parent=1 // pred_check_branch
      %43 = sbr.rel (0) target = $region17
    $region16: #{domain_specific_feature_extractor.1} parent=1 // pred_region
      %45 = vsyncadd [#allocation5], 0
      %s46 = sshll.u32 %s3, 4
      %s47 = int_to_ptr.hbm [resolvable:$true] %s46
      %s48 = sshll.u32 [#allocation6], 4
      %s49 = int_to_ptr.vmem [resolvable:$true] %s48
      %54 = dma.hbm_to_vmem [thread:$0]  %s47, 1024, %s49, [#allocation5], 64, 64, 4
    $region17: #{domain_specific_feature_extractor.1} parent=1 // pred_fallthru
      _
    // Predicated region
    $region18: #{domain_specific_feature_extractor.1} parent=1 // pred_check
      _
    $region19: #{domain_specific_feature_extractor.1} parent=1 // pred_check_branch
      %56 = sbr.rel (0) target = $region21
    $region20: #{domain_specific_feature_extractor.1} parent=1 // pred_region
      _
    $region21: #{domain_specific_feature_extractor.1} parent=1 // pred_fallthru
      _
    // Predicated region
    $region22: #{domain_specific_feature_extractor.1} parent=1 // pred_check
      _
    $region23: #{domain_specific_feature_extractor.1} parent=1 // pred_check_branch
      %58 = sbr.rel (0) target = $region25
    $region24: #{domain_specific_feature_extractor.1} parent=1 // pred_region
      _
    $region25: #{domain_specific_feature_extractor.1} parent=1 // pred_fallthru
      _
    // Predicated region
    $region26: #{domain_specific_feature_extractor.1} parent=1 // pred_check
      _
    $region27: #{domain_specific_feature_extractor.1} parent=1 // pred_check_branch
      %60 = sbr.rel (0) target = $region29
    $region28: #{domain_specific_feature_extractor.1} parent=1 // pred_region
      _
    $region29: #{domain_specific_feature_extractor.1} parent=1 // pred_fallthru
      _
    // Predicated region
    $region30: #{domain_specific_feature_extractor.1} parent=1 // pred_check
      _
    $region31: #{domain_specific_feature_extractor.1} parent=1 // pred_check_branch
      %62 = sbr.rel (0) target = $region33
    $region32: #{domain_specific_feature_extractor.1} parent=1 // pred_region
      %64 = dma.done [#allocation3], 1024
    $region33: #{domain_specific_feature_extractor.1} parent=1 // pred_fallthru
      _
    // Predicated region
    $region34: #{domain_specific_feature_extractor.1} parent=1 // pred_check
      _
    $region35: #{domain_specific_feature_extractor.1} parent=1 // pred_check_branch
      %66 = sbr.rel (0) target = $region37
    $region36: #{domain_specific_feature_extractor.1} parent=1 // pred_region
      %68 = dma.done [#allocation5], 1024
    $region37: #{domain_specific_feature_extractor.1} parent=1 // pred_fallthru
      _
    // Predicated region
    $region38: #{domain_specific_feature_extractor.1} parent=1 // pred_check
      _
    $region39: #{domain_specific_feature_extractor.1} parent=1 // pred_check_branch
      %70 = sbr.rel (0) target = $region41
    $region40: #{domain_specific_feature_extractor.1} parent=1 // pred_region
      %72 = dma.done [#allocation5], 1024
    $region41: #{domain_specific_feature_extractor.1} parent=1 // pred_fallthru
      _
    %v73 = vld [vmem:[%s0] sm:$0xf]
    %v74 = vld [vmem:[%s0 + $0x4] sm:$0xf]
    %v75 = vld [vmem:[#allocation2] sm:$0xf]
    %v76 = vld [vmem:[#allocation2 + $0x4] sm:$0xf]
    %v77 = vld [vmem:[#allocation2 + $0x8] sm:$0xf]
    %v78 = vld [vmem:[#allocation2 + $0xc] sm:$0xf]
    %v79 = vld [vmem:[#allocation2 + $0x10] sm:$0xf]
    %v80 = vld [vmem:[#allocation2 + $0x14] sm:$0xf]
    %v81 = vld [vmem:[#allocation2 + $0x18] sm:$0xf]
    %v82 = vld [vmem:[#allocation2 + $0x1c] sm:$0xf]
    %v83 = vld [vmem:[#allocation2 + $0x20] sm:$0xf]
    %v84 = vld [vmem:[#allocation2 + $0x24] sm:$0xf]
    %v85 = vld [vmem:[#allocation2 + $0x28] sm:$0xf]
    %v86 = vld [vmem:[#allocation2 + $0x2c] sm:$0xf]
    %v87 = vld [vmem:[#allocation2 + $0x30] sm:$0xf]
    %v88 = vld [vmem:[#allocation2 + $0x34] sm:$0xf]
    %v89 = vld [vmem:[#allocation2 + $0x38] sm:$0xf]
    %v90 = vld [vmem:[#allocation2 + $0x3c] sm:$0xf]
    %v91 = vld [vmem:[%s4] sm:$0x1]
    %v93 = vperm.slane %v91, 0
    %v97 = vunpack.c.l.b16 %v73
    %v98 = vunpack.c.l.b16 %v74
    %v99 = vpack.c.b16 %v98, %v97
    %v117 = vunpack.c.l.b16 %v75
    %v118 = vunpack.c.l.b16 %v76
    %v119 = vunpack.c.l.b16 %v77
    %v120 = vunpack.c.l.b16 %v78
    %v121 = vunpack.c.l.b16 %v79
    %v122 = vunpack.c.l.b16 %v80
    %v123 = vunpack.c.l.b16 %v81
    %v124 = vunpack.c.l.b16 %v82
    %v125 = vunpack.c.l.b16 %v83
    %v126 = vunpack.c.l.b16 %v84
    %v127 = vunpack.c.l.b16 %v85
    %v128 = vunpack.c.l.b16 %v86
    %v129 = vunpack.c.l.b16 %v87
    %v130 = vunpack.c.l.b16 %v88
    %v131 = vunpack.c.l.b16 %v89
    %v132 = vunpack.c.l.b16 %v90
    %v133 = vpack.c.b16 %v118, %v117
    %v134 = vpack.c.b16 %v120, %v119
    %v135 = vpack.c.b16 %v122, %v121
    %v136 = vpack.c.b16 %v124, %v123
    %v137 = vpack.c.b16 %v126, %v125
    %v138 = vpack.c.b16 %v128, %v127
    %v139 = vpack.c.b16 %v130, %v129
    %v140 = vpack.c.b16 %v132, %v131
    %149 = vmatpush.bf16.msra.mxu0 %v140
    %150 = vmatpush.bf16.msra.mxu0 %v139
    %151 = vmatpush.bf16.msra.mxu0 %v138
    %152 = vmatpush.bf16.msra.mxu0 %v137
    %153 = vmatpush.bf16.msra.mxu0 %v136
    %154 = vmatpush.bf16.msra.mxu0 %v135
    %155 = vmatpush.bf16.msra.mxu0 %v134
    %156 = vmatpush.bf16.msra.mxu0 %v133
    %157 = vmatmul.bf16.gmra.mxu0 %v99
    %v158 = vpop.f32.mrf.mxu0
    %v159 = vadd.f32 %v93, %v158
    %v160 = vpop.f32.mrf.mxu0
    %v161 = vadd.f32 %v93, %v160
    %162 = vdwg.mxu0
    %v163 = vmax.f32 %v159, 0.0
    %v164 = vmax.f32 %v161, 0.0
    %v165 = vpack.c.bf16 %v164, %v163
    %v166 = vld [vmem:[#allocation4] sm:$0xf]
    %v167 = vld [vmem:[#allocation4 + $0x4] sm:$0xf]
    %v168 = vld [vmem:[#allocation4 + $0x8] sm:$0xf]
    %v169 = vld [vmem:[#allocation4 + $0xc] sm:$0xf]
    %v170 = vld [vmem:[#allocation4 + $0x10] sm:$0xf]
    %v171 = vld [vmem:[#allocation4 + $0x14] sm:$0xf]
    %v172 = vld [vmem:[#allocation4 + $0x18] sm:$0xf]
    %v173 = vld [vmem:[#allocation4 + $0x1c] sm:$0xf]
    %v174 = vld [vmem:[#allocation4 + $0x20] sm:$0xf]
    %v175 = vld [vmem:[#allocation4 + $0x24] sm:$0xf]
    %v176 = vld [vmem:[#allocation4 + $0x28] sm:$0xf]
    %v177 = vld [vmem:[#allocation4 + $0x2c] sm:$0xf]
    %v178 = vld [vmem:[#allocation4 + $0x30] sm:$0xf]
    %v179 = vld [vmem:[#allocation4 + $0x34] sm:$0xf]
    %v180 = vld [vmem:[#allocation4 + $0x38] sm:$0xf]
    %v181 = vld [vmem:[#allocation4 + $0x3c] sm:$0xf]
    %v182 = vld [vmem:[%s5] sm:$0x1]
    %v184 = vperm.slane %v182, 0
    %v202 = vunpack.c.l.b16 %v166
    %v203 = vunpack.c.l.b16 %v167
    %v204 = vunpack.c.l.b16 %v168
    %v205 = vunpack.c.l.b16 %v169
    %v206 = vunpack.c.l.b16 %v170
    %v207 = vunpack.c.l.b16 %v171
    %v208 = vunpack.c.l.b16 %v172
    %v209 = vunpack.c.l.b16 %v173
    %v210 = vunpack.c.l.b16 %v174
    %v211 = vunpack.c.l.b16 %v175
    %v212 = vunpack.c.l.b16 %v176
    %v213 = vunpack.c.l.b16 %v177
    %v214 = vunpack.c.l.b16 %v178
    %v215 = vunpack.c.l.b16 %v179
    %v216 = vunpack.c.l.b16 %v180
    %v217 = vunpack.c.l.b16 %v181
    %v218 = vpack.c.b16 %v203, %v202
    %v219 = vpack.c.b16 %v205, %v204
    %v220 = vpack.c.b16 %v207, %v206
    %v221 = vpack.c.b16 %v209, %v208
    %v222 = vpack.c.b16 %v211, %v210
    %v223 = vpack.c.b16 %v213, %v212
    %v224 = vpack.c.b16 %v215, %v214
    %v225 = vpack.c.b16 %v217, %v216
    %234 = vmatpush.bf16.msra.mxu0 %v225
    %235 = vmatpush.bf16.msra.mxu0 %v224
    %236 = vmatpush.bf16.msra.mxu0 %v223
    %237 = vmatpush.bf16.msra.mxu0 %v222
    %238 = vmatpush.bf16.msra.mxu0 %v221
    %239 = vmatpush.bf16.msra.mxu0 %v220
    %240 = vmatpush.bf16.msra.mxu0 %v219
    %241 = vmatpush.bf16.msra.mxu0 %v218
    %242 = vmatmul.bf16.gmra.mxu0 %v165
    %v243 = vpop.f32.mrf.mxu0
    %v244 = vadd.f32 %v184, %v243
    %v245 = vpop.f32.mrf.mxu0
    %v246 = vadd.f32 %v184, %v245
    %247 = vdwg.mxu0
    %v248 = vmax.f32 %v244, 0.0
    %v249 = vmax.f32 %v246, 0.0
    %v250 = vpack.c.bf16 %v249, %v248
    %v251 = vld [vmem:[#allocation6] sm:$0xf]
    %v252 = vld [vmem:[#allocation6 + $0x4] sm:$0xf]
    %v253 = vld [vmem:[#allocation6 + $0x8] sm:$0xf]
    %v254 = vld [vmem:[#allocation6 + $0xc] sm:$0xf]
    %v255 = vld [vmem:[#allocation6 + $0x10] sm:$0xf]
    %v256 = vld [vmem:[#allocation6 + $0x14] sm:$0xf]
    %v257 = vld [vmem:[#allocation6 + $0x18] sm:$0xf]
    %v258 = vld [vmem:[#allocation6 + $0x1c] sm:$0xf]
    %v259 = vld [vmem:[#allocation6 + $0x20] sm:$0xf]
    %v260 = vld [vmem:[#allocation6 + $0x24] sm:$0xf]
    %v261 = vld [vmem:[#allocation6 + $0x28] sm:$0xf]
    %v262 = vld [vmem:[#allocation6 + $0x2c] sm:$0xf]
    %v263 = vld [vmem:[#allocation6 + $0x30] sm:$0xf]
    %v264 = vld [vmem:[#allocation6 + $0x34] sm:$0xf]
    %v265 = vld [vmem:[#allocation6 + $0x38] sm:$0xf]
    %v266 = vld [vmem:[#allocation6 + $0x3c] sm:$0xf]
    %v267 = vld [vmem:[%s6] sm:$0x1]
    %v269 = vperm.slane %v267, 0
    %v287 = vunpack.c.l.b16 %v251
    %v288 = vunpack.c.l.b16 %v252
    %v289 = vunpack.c.l.b16 %v253
    %v290 = vunpack.c.l.b16 %v254
    %v291 = vunpack.c.l.b16 %v255
    %v292 = vunpack.c.l.b16 %v256
    %v293 = vunpack.c.l.b16 %v257
    %v294 = vunpack.c.l.b16 %v258
    %v295 = vunpack.c.l.b16 %v259
    %v296 = vunpack.c.l.b16 %v260
    %v297 = vunpack.c.l.b16 %v261
    %v298 = vunpack.c.l.b16 %v262
    %v299 = vunpack.c.l.b16 %v263
    %v300 = vunpack.c.l.b16 %v264
    %v301 = vunpack.c.l.b16 %v265
    %v302 = vunpack.c.l.b16 %v266
    %v303 = vpack.c.b16 %v288, %v287
    %v304 = vpack.c.b16 %v290, %v289
    %v305 = vpack.c.b16 %v292, %v291
    %v306 = vpack.c.b16 %v294, %v293
    %v307 = vpack.c.b16 %v296, %v295
    %v308 = vpack.c.b16 %v298, %v297
    %v309 = vpack.c.b16 %v300, %v299
    %v310 = vpack.c.b16 %v302, %v301
    %319 = vmatpush.bf16.msra.mxu0 %v310
    %320 = vmatpush.bf16.msra.mxu0 %v309
    %321 = vmatpush.bf16.msra.mxu0 %v308
    %322 = vmatpush.bf16.msra.mxu0 %v307
    %323 = vmatpush.bf16.msra.mxu0 %v306
    %324 = vmatpush.bf16.msra.mxu0 %v305
    %325 = vmatpush.bf16.msra.mxu0 %v304
    %326 = vmatpush.bf16.msra.mxu0 %v303
    %327 = vmatmul.bf16.gmra.mxu0 %v250
    %v328 = vpop.f32.mrf.mxu0
    %v329 = vadd.f32 %v269, %v328
    %v330 = vpop.f32.mrf.mxu0
    %v331 = vadd.f32 %v269, %v330
    %332 = vdwg.mxu0
    %v333 = vpack.c.bf16 %v329, %v329
    %v334 = vpack.c.bf16 %v331, %v331
    %335 = vst [vmem:[%s7] sm:$0xf] %v333
    %336 = vst [vmem:[%s7 + $0x4] sm:$0xf] %v334
    // Predicated region
    $region42: #{domain_specific_feature_extractor.1} parent=1 // pred_check
      _
    $region43: #{domain_specific_feature_extractor.1} parent=1 // pred_check_branch
      %338 = sbr.rel (0) target = $region45
    $region44: #{domain_specific_feature_extractor.1} parent=1 // pred_region
      _
    $region45: #{domain_specific_feature_extractor.1} parent=1 // pred_fallthru
      _
    // Predicated region
    $region46: #{domain_specific_feature_extractor.1} parent=1 // pred_check
      _
    $region47: #{domain_specific_feature_extractor.1} parent=1 // pred_check_branch
      %340 = sbr.rel (0) target = $region49
    $region48: #{domain_specific_feature_extractor.1} parent=1 // pred_region
      _
    $region49: #{domain_specific_feature_extractor.1} parent=1 // pred_fallthru
      _
    %341 = vsyncpa [#allocation3], 1
    %342 = vsyncpa [#allocation5], 1

</llo_original>
